<compile_context>
chip_gen: v5e
topology: v5e:2x2
jax: 0.10.0
libtpu: 0.0.40
codegen_flags: <defaults>
</compile_context>

<pallas_src>
import jax
import jax.numpy as jnp
from jax.experimental import pallas as pl
from jax.experimental.pallas import tpu as pltpu

_SUBLANE = 8
_NEG_SLOPE = 0.3  # matches nn.LeakyReLU(0.3) in the torch module


def _round_up(n, m):
    return ((n + m - 1) // m) * m


def _leaky_relu(x, slope=_NEG_SLOPE):
    # Valid rewrite of where(x > 0, x, slope*x) because slope in (0, 1).
    return jnp.maximum(x, slope * x)


def encoder_kernel(x_ref, w1_ref, b1_ref, w2_ref, b2_ref, out_ref):
    # hidden = LeakyReLU(x @ W1 + b1)      (bf16 MXU matmul, f32 accumulation)
    h = jnp.dot(x_ref[...], w1_ref[...], preferred_element_type=jnp.float32)
    h = _leaky_relu(h + b1_ref[...])
    # [mean | log_var] = LeakyReLU(hidden @ [Wmu | Wvar] + [bmu | bvar])
    h = h.astype(w2_ref.dtype)
    y = jnp.dot(h, w2_ref[...], preferred_element_type=jnp.float32)
    out_ref[...] = _leaky_relu(y + b2_ref[...]).astype(out_ref.dtype)


def prepare_encoder_params(params, compute_dtype=jnp.bfloat16):
    """One-time transform of torch-style weights (call once at model init).

    Fuses the mu/var heads into a single (hidden, 2*latent) matrix and casts
    the streamed weight matrices to `compute_dtype`.  Biases stay f32 (they
    are added to the f32 matmul accumulator).
    """
    w1, b1, wmu, bmu, wvar, bvar = params
    w2 = jnp.concatenate([wmu, wvar], axis=1)   # (hidden, 2*latent)
    b2 = jnp.concatenate([bmu, bvar], axis=1)   # (1, 2*latent)
    return (w1.astype(compute_dtype), b1.astype(jnp.float32),
            w2.astype(compute_dtype), b2.astype(jnp.float32))


def encoder_forward(x, prepared, *, block_b=1024):
    """Pallas TPU implementation of Encoder.forward.

    x: (B, input_dim + condition_dim)
    prepared: output of prepare_encoder_params
    returns (mean, log_var), each (B, latent_dim) float32
    """
    w1, b1, w2, b2 = prepared
    B, in_dim = x.shape
    hidden_dim = w1.shape[1]
    out_width = w2.shape[1]          # 2 * latent_dim
    latent_dim = out_width // 2

    # Stream x in the compute dtype (bf16).  Ideally the producer already
    # emits bf16 so this cast fuses away / is a no-op.
    x = x.astype(w1.dtype)

    # Batch tile: multiple of 8 sublanes, target >= 4 grid steps (v7x megacore
    # + pipelining), capped at block_b rows.
    tb = min(_round_up(max(_SUBLANE, pl.cdiv(B, 4)), _SUBLANE),
             _round_up(block_b, _SUBLANE))
    grid = (pl.cdiv(B, tb),)

    out = pl.pallas_call(
        encoder_kernel,
        out_shape=jax.ShapeDtypeStruct((B, out_width), jnp.float32),
        grid_spec=pltpu.PrefetchScalarGridSpec(
            num_scalar_prefetch=0,
            grid=grid,
            in_specs=[
                pl.BlockSpec((tb, in_dim), lambda i: (i, 0)),        # x rows (streamed)
                pl.BlockSpec((in_dim, hidden_dim), lambda i: (0, 0)),  # W1 (resident)
                pl.BlockSpec((1, hidden_dim), lambda i: (0, 0)),       # b1 (resident)
                pl.BlockSpec((hidden_dim, out_width), lambda i: (0, 0)),  # [Wmu|Wvar]
                pl.BlockSpec((1, out_width), lambda i: (0, 0)),           # [bmu|bvar]
            ],
            out_specs=pl.BlockSpec((tb, out_width), lambda i: (i, 0)),
        ),
        compiler_params=pltpu.CompilerParams(
            dimension_semantics=("parallel",),
        ),
    )(x, w1, b1, w2, b2)

    mean = out[:, :latent_dim]
    log_var = out[:, latent_dim:]
    return mean, log_var


def init_params(key, input_dim, hidden_dim, latent_dim, condition_dim):
    """Deterministic synthetic weights (torch Linear shapes, stored as (in, out))."""
    in_dim = input_dim + condition_dim
    k1, k2, k3, k4, k5, k6 = jax.random.split(key, 6)
    scale = 0.1
    w1 = scale * jax.random.normal(k1, (in_dim, hidden_dim), jnp.float32)
    b1 = scale * jax.random.normal(k2, (1, hidden_dim), jnp.float32)
    wmu = scale * jax.random.normal(k3, (hidden_dim, latent_dim), jnp.float32)
    bmu = scale * jax.random.normal(k4, (1, latent_dim), jnp.float32)
    wvar = scale * jax.random.normal(k5, (hidden_dim, latent_dim), jnp.float32)
    bvar = scale * jax.random.normal(k6, (1, latent_dim), jnp.float32)
    return (w1, b1, wmu, bmu, wvar, bvar)


def encoder_reference_f32(x, params):
    """Pure-JAX f32 reference of the torch forward (loose check vs bf16 kernel)."""
    w1, b1, wmu, bmu, wvar, bvar = params
    h = _leaky_relu(x @ w1 + b1)
    mean = _leaky_relu(h @ wmu + bmu)
    log_var = _leaky_relu(h @ wvar + bvar)
    return mean, log_var


def encoder_reference_mirrored(x, prepared):
    """Pure-JAX reference mirroring the kernel's bf16 casts (tight check)."""
    w1, b1, w2, b2 = prepared
    latent = w2.shape[1] // 2
    xq = x.astype(w1.dtype).astype(jnp.float32)
    h = _leaky_relu(xq @ w1.astype(jnp.float32) + b1)
    hq = h.astype(w2.dtype).astype(jnp.float32)
    y = _leaky_relu(hq @ w2.astype(jnp.float32) + b2)
    return y[:, :latent], y[:, latent:]


if __name__ == "__main__":
    # Small shapes consistent with the module's forward:
    # batch=8, input_dim=16, condition_dim=8, hidden_dim=32, latent_dim=8
    B, input_dim, condition_dim, hidden_dim, latent_dim = 8, 16, 8, 32, 8

    key = jax.random.PRNGKey(0)
    kx, kp = jax.random.split(key)
    x = jax.random.normal(kx, (B, input_dim + condition_dim), jnp.float32)
    params = init_params(kp, input_dim, hidden_dim, latent_dim, condition_dim)

    prepared = prepare_encoder_params(params)      # one-time weight prep
    mean, log_var = encoder_forward(x, prepared)
    jax.block_until_ready((mean, log_var))

    assert mean.shape == (B, latent_dim) and log_var.shape == (B, latent_dim)

    # Tight check against a reference that mirrors the kernel's bf16 casts.
    m_ref, v_ref = encoder_reference_mirrored(x, prepared)
    assert jnp.allclose(mean, m_ref, atol=1e-2, rtol=1e-2)
    assert jnp.allclose(log_var, v_ref, atol=1e-2, rtol=1e-2)

    # Loose sanity check against the pure-f32 torch-equivalent forward.
    m_f32, v_f32 = encoder_reference_f32(x, params)
    assert jnp.allclose(mean, m_f32, atol=3e-2, rtol=3e-2)
    assert jnp.allclose(log_var, v_f32, atol=3e-2, rtol=3e-2)

    print("KERNEL_OK")
</pallas_src>

<mosaic_0001>
module attributes {stable_mosaic.version = 11 : i64} {
  func.func @encoder_kernel(%arg0: i32, %arg1: memref<8x24xbf16, #tpu.memory_space<vmem>>, %arg2: memref<24x32xbf16, #tpu.memory_space<vmem>>, %arg3: memref<1x32xf32, #tpu.memory_space<vmem>>, %arg4: memref<32x16xbf16, #tpu.memory_space<vmem>>, %arg5: memref<1x16xf32, #tpu.memory_space<vmem>>, %arg6: memref<8x16xf32, #tpu.memory_space<vmem>>) attributes {dimension_semantics = [#tpu.dimension_semantics<parallel>], iteration_bounds = array<i64: 1>, scalar_prefetch = 0 : i64, scratch_operands = 0 : i64, tpu.core_type = #tpu.core_type<tc>, window_params = [{transform_indices = @transform_0, window_bounds = array<i64: 8, 24>}, {pipeline_mode = #tpu.pipeline_mode<synchronous>, transform_indices = @transform_1, window_bounds = array<i64: 24, 32>}, {pipeline_mode = #tpu.pipeline_mode<synchronous>, transform_indices = @transform_2, window_bounds = array<i64: 1, 32>}, {pipeline_mode = #tpu.pipeline_mode<synchronous>, transform_indices = @transform_3, window_bounds = array<i64: 32, 16>}, {pipeline_mode = #tpu.pipeline_mode<synchronous>, transform_indices = @transform_4, window_bounds = array<i64: 1, 16>}, {transform_indices = @transform_5, window_bounds = array<i64: 8, 16>}]} {
    %c0 = arith.constant 0 : index
    %c0_0 = arith.constant 0 : index
    %0 = vector.load %arg1[%c0, %c0_0] : memref<8x24xbf16, #tpu.memory_space<vmem>>, vector<8x24xbf16>
    %c0_1 = arith.constant 0 : index
    %c0_2 = arith.constant 0 : index
    %1 = vector.load %arg2[%c0_1, %c0_2] : memref<24x32xbf16, #tpu.memory_space<vmem>>, vector<24x32xbf16>
    %cst = arith.constant dense<0.000000e+00> : vector<8x32xf32>
    %2 = tpu.matmul %0, %1, %cst {dimension_numbers = #tpu.dot_dimension_numbers<[1], [0], [0], [1], [0, 0, 1, 1], [], []>} : vector<8x24xbf16>, vector<24x32xbf16>, vector<8x32xf32> -> vector<8x32xf32>
    %c0_3 = arith.constant 0 : index
    %c0_4 = arith.constant 0 : index
    %3 = vector.load %arg3[%c0_3, %c0_4] : memref<1x32xf32, #tpu.memory_space<vmem>>, vector<1x32xf32>
    %4 = vector.broadcast %3 : vector<1x32xf32> to vector<8x32xf32>
    %5 = arith.addf %2, %4 : vector<8x32xf32>
    %cst_5 = arith.constant 3.000000e-01 : f32
    %6 = vector.broadcast %cst_5 : f32 to vector<8x32xf32>
    %7 = arith.mulf %6, %5 : vector<8x32xf32>
    %8 = arith.maximumf %5, %7 : vector<8x32xf32>
    %9 = arith.truncf %8 : vector<8x32xf32> to vector<8x32xbf16>
    %c0_6 = arith.constant 0 : index
    %c0_7 = arith.constant 0 : index
    %10 = vector.load %arg4[%c0_6, %c0_7] : memref<32x16xbf16, #tpu.memory_space<vmem>>, vector<32x16xbf16>
    %cst_8 = arith.constant dense<0.000000e+00> : vector<8x16xf32>
    %11 = tpu.matmul %9, %10, %cst_8 {dimension_numbers = #tpu.dot_dimension_numbers<[1], [0], [0], [1], [0, 0, 1, 1], [], []>} : vector<8x32xbf16>, vector<32x16xbf16>, vector<8x16xf32> -> vector<8x16xf32>
    %c0_9 = arith.constant 0 : index
    %c0_10 = arith.constant 0 : index
    %12 = vector.load %arg5[%c0_9, %c0_10] : memref<1x16xf32, #tpu.memory_space<vmem>>, vector<1x16xf32>
    %13 = vector.broadcast %12 : vector<1x16xf32> to vector<8x16xf32>
    %14 = arith.addf %11, %13 : vector<8x16xf32>
    %cst_11 = arith.constant 3.000000e-01 : f32
    %15 = vector.broadcast %cst_11 : f32 to vector<8x16xf32>
    %16 = arith.mulf %15, %14 : vector<8x16xf32>
    %17 = arith.maximumf %14, %16 : vector<8x16xf32>
    %c0_12 = arith.constant 0 : index
    %c0_13 = arith.constant 0 : index
    %18 = vector.load %arg6[%c0_12, %c0_13] : memref<8x16xf32, #tpu.memory_space<vmem>>, vector<8x16xf32>
    tpu.vector_store %arg6[%c0_12, %c0_13], %17 {strides = array<i32>} : memref<8x16xf32, #tpu.memory_space<vmem>>, vector<8x16xf32>,
    return
  }
  func.func @transform_0(%arg0: i32) -> (i32, i32) {
    %c0_i32 = arith.constant 0 : i32
    %c0_i32_0 = arith.constant 0 : i32
    return %arg0, %c0_i32 : i32, i32
  }
  func.func @transform_1(%arg0: i32) -> (i32, i32) {
    %c0_i32 = arith.constant 0 : i32
    %c0_i32_0 = arith.constant 0 : i32
    %c0_i32_1 = arith.constant 0 : i32
    return %c0_i32, %c0_i32_0 : i32, i32
  }
  func.func @transform_2(%arg0: i32) -> (i32, i32) {
    %c0_i32 = arith.constant 0 : i32
    %c0_i32_0 = arith.constant 0 : i32
    %c0_i32_1 = arith.constant 0 : i32
    return %c0_i32, %c0_i32_0 : i32, i32
  }
  func.func @transform_3(%arg0: i32) -> (i32, i32) {
    %c0_i32 = arith.constant 0 : i32
    %c0_i32_0 = arith.constant 0 : i32
    %c0_i32_1 = arith.constant 0 : i32
    return %c0_i32, %c0_i32_0 : i32, i32
  }
  func.func @transform_4(%arg0: i32) -> (i32, i32) {
    %c0_i32 = arith.constant 0 : i32
    %c0_i32_0 = arith.constant 0 : i32
    %c0_i32_1 = arith.constant 0 : i32
    return %c0_i32, %c0_i32_0 : i32, i32
  }
  func.func @transform_5(%arg0: i32) -> (i32, i32) {
    %c0_i32 = arith.constant 0 : i32
    %c0_i32_0 = arith.constant 0 : i32
    return %arg0, %c0_i32 : i32, i32
  }
}

</mosaic_0001>

<llo_original>
// kernel: tpu_custom_call.1
$region0: #{tpu_custom_call.1}
  #allocation0 [shape = 'u32[]', space=smem, size = 0x4, offset = 0x4, fixed_abs, tag = 'smem constant byte address 0x4 - core index']
  #allocation1 [shape = 'u32[72,128]{1,0:T(1,128)}', space=vmem, size = 0x9000, scoped, tag = 'internal scratch']
  %s0 = inlined_call_operand.vmem [shape: bf16[8,24], index: 0, kind: input, shape index: {}]
  %s1 = inlined_call_operand.vmem [shape: bf16[24,32], index: 1, kind: input, shape index: {}]
  %s2 = inlined_call_operand.vmem [shape: f32[1,32], index: 2, kind: input, shape index: {}]
  %s3 = inlined_call_operand.vmem [shape: bf16[32,16], index: 3, kind: input, shape index: {}]
  %s4 = inlined_call_operand.vmem [shape: f32[1,16], index: 4, kind: input, shape index: {}]
  %s5 = inlined_call_operand.hbm [shape: f32[8,16], index: 5, kind: output, shape index: {}]
  %s6 = sld [smem:[#allocation0]]
  $region30: #{tpu_custom_call.1} parent=0
    _
  %s8 = ssub.s32 1, %s6
  %s9 = scalar_select 0, %s8, %s6
  $region1: #{tpu_custom_call.1} parent=0
    #allocation2 [shape = 'u8[4096]{0}', space=vmem, size = 0x1000, scoped, tag = 'output window, operand 0, single buffered']
    #allocation3 [shape = 's32[1]{0}', space=sflag, size = 0x4, scoped, tag = 'scoped memory for tpu_custom_call.1']
    %10 = vsyncpa [#allocation3], 0
    // Predicated region
    $region2: #{tpu_custom_call.1} parent=1 // pred_check
      _
    $region3: #{tpu_custom_call.1} parent=1 // pred_check_branch
      %12 = sbr.rel (0) target = $region5
    $region4: #{tpu_custom_call.1} parent=1 // pred_region
      _
    $region5: #{tpu_custom_call.1} parent=1 // pred_fallthru
      _
    // Predicated region
    $region6: #{tpu_custom_call.1} parent=1 // pred_check
      _
    $region7: #{tpu_custom_call.1} parent=1 // pred_check_branch
      %14 = sbr.rel (0) target = $region9
    $region8: #{tpu_custom_call.1} parent=1 // pred_region
      _
    $region9: #{tpu_custom_call.1} parent=1 // pred_fallthru
      _
    // Predicated region
    $region10: #{tpu_custom_call.1} parent=1 // pred_check
      _
    $region11: #{tpu_custom_call.1} parent=1 // pred_check_branch
      %16 = sbr.rel (0) target = $region13
    $region12: #{tpu_custom_call.1} parent=1 // pred_region
      _
    $region13: #{tpu_custom_call.1} parent=1 // pred_fallthru
      _
    // Predicated region
    $region14: #{tpu_custom_call.1} parent=1 // pred_check
      _
    $region15: #{tpu_custom_call.1} parent=1 // pred_check_branch
      %18 = sbr.rel (0) target = $region17
    $region16: #{tpu_custom_call.1} parent=1 // pred_region
      _
    $region17: #{tpu_custom_call.1} parent=1 // pred_fallthru
      _
    // Predicated region
    $region18: #{tpu_custom_call.1} parent=1 // pred_check
      _
    $region19: #{tpu_custom_call.1} parent=1 // pred_check_branch
      %20 = sbr.rel (0) target = $region21
    $region20: #{tpu_custom_call.1} parent=1 // pred_region
      _
    $region21: #{tpu_custom_call.1} parent=1 // pred_fallthru
      _
    %v22 = vld [vmem:[%s0] sm:$0xf]
    %v23 = vld [vmem:[%s1] sm:$0xf]
    %v24 = vld [vmem:[%s1 + $0x4] sm:$0xf]
    %v25 = vld [vmem:[%s1 + $0x8] sm:$0xf]
    %v26 = vld [vmem:[%s2] sm:$0x1]
    %v28 = vperm.slane %v26, 0
    %v33 = vunpack.c.l.b16 %v23
    %v34 = vunpack.c.l.b16 %v24
    %v35 = vunpack.c.l.b16 %v25
    %v36 = vpack.c.b16 %v34, %v33
    %v37 = vpack.c.b16 %v35, %v35
    %vm39 = vcmask 195584
    %v41 = vsel %vm39, %v22, 0
    %vm43 = vcmask 1043456
    %v45 = vsel %vm43, %v37, 0
    %47 = vmatpush.bf16.msra.mxu0 0
    %48 = vmatpush.bf16.msra.mxu0 0
    %49 = vmatpush.bf16.msra.mxu0 0
    %50 = vmatpush.bf16.msra.mxu0 0
    %51 = vmatpush.bf16.msra.mxu0 0
    %52 = vmatpush.bf16.msra.mxu0 0
    %53 = vmatpush.bf16.msra.mxu0 %v45
    %54 = vmatpush.bf16.msra.mxu0 %v36
    %55 = vmatmul.bf16.gmra.mxu0 %v41
    %v56 = vpop.f32.mrf.mxu0
    %v57 = vadd.f32 %v28, %v56
    %v58 = vpop.f32.mrf.mxu0
    %59 = vdwg.mxu0
    %v60 = vmul.f32 %v57, 0.3
    %v61 = vmax.f32 %v57, %v60
    %v62 = vpack.c.bf16 %v61, %v61
    %v63 = vld [vmem:[%s3] sm:$0xf]
    %v64 = vld [vmem:[%s3 + $0x4] sm:$0xf]
    %v65 = vld [vmem:[%s3 + $0x8] sm:$0xf]
    %v66 = vld [vmem:[%s3 + $0xc] sm:$0xf]
    %v67 = vld [vmem:[%s4] sm:$0x1]
    %v69 = vperm.slane %v67, 0
    %v75 = vunpack.c.l.b16 %v63
    %v76 = vunpack.c.l.b16 %v64
    %v77 = vunpack.c.l.b16 %v65
    %v78 = vunpack.c.l.b16 %v66
    %v79 = vpack.c.b16 %v76, %v75
    %v80 = vpack.c.b16 %v78, %v77
    %vm83 = vcmask 261120
    %v85 = vsel %vm83, %v62, 0
    %87 = vmatpush.bf16.msra.mxu0 0
    %88 = vmatpush.bf16.msra.mxu0 0
    %89 = vmatpush.bf16.msra.mxu0 0
    %90 = vmatpush.bf16.msra.mxu0 0
    %91 = vmatpush.bf16.msra.mxu0 0
    %92 = vmatpush.bf16.msra.mxu0 0
    %93 = vmatpush.bf16.msra.mxu0 %v80
    %94 = vmatpush.bf16.msra.mxu0 %v79
    %95 = vmatmul.bf16.gmra.mxu0 %v85
    %v96 = vpop.f32.mrf.mxu0
    %v97 = vadd.f32 %v69, %v96
    %v98 = vpop.f32.mrf.mxu0
    %99 = vdwg.mxu0
    %v100 = vmul.f32 %v97, 0.3
    %v101 = vmax.f32 %v97, %v100
    %vm102 = vcmask 130048
    %103 = vst.msk [vmem:[#allocation2] sm:$0xff] %vm102, %v101
    // Predicated region
    $region22: #{tpu_custom_call.1} parent=1 // pred_check
      _
    $region23: #{tpu_custom_call.1} parent=1 // pred_check_branch
      %105 = sbr.rel (0) target = $region25
    $region24: #{tpu_custom_call.1} parent=1 // pred_region
      %107 = vsyncadd [#allocation3], 0
      %s109 = sshll.u32 [#allocation2], 4
      %s110 = int_to_ptr.vmem [resolvable:$true] %s109
      %s111 = sshll.u32 %s5, 4
      %s112 = int_to_ptr.hbm [resolvable:$true] %s111
      %114 = dma.vmem_to_hbm [thread:$0]  %s110, 128, %s112, [#allocation3]
    $region25: #{tpu_custom_call.1} parent=1 // pred_fallthru
      _
    // Predicated region
    $region26: #{tpu_custom_call.1} parent=1 // pred_check
      _
    $region27: #{tpu_custom_call.1} parent=1 // pred_check_branch
      %116 = sbr.rel (0) target = $region29
    $region28: #{tpu_custom_call.1} parent=1 // pred_region
      %118 = dma.done [#allocation3], 128
    $region29: #{tpu_custom_call.1} parent=1 // pred_fallthru
      _
    %119 = vsyncpa [#allocation3], 1

</llo_original>
